<compile_context>
chip_gen: v7x
topology: tpu7x:2x2x1
jax: 0.10.0
libtpu: 0.0.40
codegen_flags: <defaults>
</compile_context>

<pallas_src>
import functools

import jax
import jax.numpy as jnp
from jax.experimental import pallas as pl
from jax.experimental.pallas import tpu as pltpu


def _round_up(n, m):
    return ((n + m - 1) // m) * m


def _min_tile_rows():
    """MXU-M-matched minimum row tile: 128 on v5e, 256 on v6e/v7x."""
    try:
        kind = jax.devices()[0].device_kind.lower()
    except Exception:  # pragma: no cover - defensive
        kind = ""
    return 128 if "v5" in kind else 256


def _choose_tile_rows(n_rows, tile_rows=None):
    """Row-tile selection.

    - default 512 rows (large DMAs -> ~85% of HBM roofline), floored at the
      MXU-M-matched minimum so matmul passes stay full,
    - single block when the whole problem fits in one minimum tile,
    - otherwise capped so the grid has >= 2 "parallel" steps (v7x megacore),
    - always a multiple of 8 (sublane) and never larger than the row count,
      so the only ragged block is the trailing one.
    """
    min_tile = _min_tile_rows()
    if tile_rows is None:
        tile_rows = 512
    tile_rows = max(tile_rows, min_tile)
    if n_rows <= min_tile:
        return max(8, (n_rows // 8) * 8)
    two_way = _round_up(-(-n_rows // 2), min_tile)
    return min(tile_rows, two_way)


def _text_projector_kernel(x_ref, w_ref, b_ref, g_ref, beta_ref, o_ref, *,
                           d_true):
    """y = LayerNorm(x @ W + b) * gamma + beta, eps=1e-12 (RoBERTa-style LN).

    x arrives in its native dtype and is cast to bf16 only at the MXU
    boundary; accumulation and all LN math are f32.  `d_true` is the
    un-padded d_model; LN statistics are computed over it.
    """
    x = x_ref[...].astype(jnp.bfloat16)                       # [tm, H]
    h = jnp.dot(x, w_ref[...], preferred_element_type=jnp.float32)  # MXU, f32
    h = h + b_ref[...]                                        # [1, Dp] f32

    d_pad = h.shape[-1]
    if d_pad != d_true:
        # Padded lanes of h are exactly zero (zero-padded W columns / bias),
        # so only the centered term needs masking.
        lane = jax.lax.broadcasted_iota(jnp.int32, h.shape, dimension=1)
        mean = jnp.sum(h, axis=-1, keepdims=True) * (1.0 / d_true)
        cent = jnp.where(lane < d_true, h - mean, 0.0)
    else:
        mean = jnp.mean(h, axis=-1, keepdims=True)
        cent = h - mean
    var = jnp.sum(cent * cent, axis=-1, keepdims=True) * (1.0 / d_true)
    inv = jax.lax.rsqrt(var + 1e-12)
    # Dropout(0.1) is identity in eval / inference mode.
    o_ref[...] = (cent * (inv * g_ref[...]) + beta_ref[...]).astype(o_ref.dtype)


def prepare_text_projector_params(w, b, gamma, beta):
    """Pad d_model to a lane-dense multiple of 128 and cast ONCE.

    Call at parameter-load time; the returned dict is reused by every forward
    call so no per-call pad / cast passes over the HxD weight remain.
    """
    H, D = w.shape
    D_pad = _round_up(D, 128)
    pad = D_pad - D
    if pad:
        w = jnp.pad(w, ((0, 0), (0, pad)))
        b = jnp.pad(b, (0, pad))
        gamma = jnp.pad(gamma, (0, pad))
        beta = jnp.pad(beta, (0, pad))
    return {
        "w": w.astype(jnp.bfloat16),                        # MXU-native, resident
        "b": b.reshape(1, D_pad).astype(jnp.float32),
        "gamma": gamma.reshape(1, D_pad).astype(jnp.float32),
        "beta": beta.reshape(1, D_pad).astype(jnp.float32),
        "d_true": D,
        "d_pad": D_pad,
    }


def text_projector_pallas(x, prepared, *, tile_rows=None, out_dtype=None,
                          keep_padded_d=False):
    """x: [N, H] (f32 or bf16) -> [N, D] fused Linear + LayerNorm."""
    N, H = x.shape
    D, D_pad = prepared["d_true"], prepared["d_pad"]
    assert prepared["w"].shape[0] == H
    if out_dtype is None:
        out_dtype = x.dtype

    # Only the degenerate < 8-row case pads (a handful of rows, negligible);
    # otherwise the ragged trailing block is handled by the pipeline itself.
    n_rows = N
    if N < 8:
        x = jnp.pad(x, ((0, 8 - N), (0, 0)))
        n_rows = 8

    tile_rows = _choose_tile_rows(n_rows, tile_rows)
    grid = pl.cdiv(n_rows, tile_rows)

    kernel = functools.partial(_text_projector_kernel, d_true=D)

    y = pl.pallas_call(
        kernel,
        out_shape=jax.ShapeDtypeStruct((n_rows, D_pad), out_dtype),
        grid_spec=pltpu.PrefetchScalarGridSpec(
            num_scalar_prefetch=0,
            grid=(grid,),
            in_specs=[
                pl.BlockSpec((tile_rows, H), lambda i: (i, 0)),   # x (streamed)
                pl.BlockSpec((H, D_pad), lambda i: (0, 0)),       # W  (resident)
                pl.BlockSpec((1, D_pad), lambda i: (0, 0)),       # bias
                pl.BlockSpec((1, D_pad), lambda i: (0, 0)),       # LN gamma
                pl.BlockSpec((1, D_pad), lambda i: (0, 0)),       # LN beta
            ],
            out_specs=pl.BlockSpec((tile_rows, D_pad), lambda i: (i, 0)),
        ),
        compiler_params=pltpu.CompilerParams(
            dimension_semantics=("parallel",),
            # tile=1024, H=768, D_pad<=768 double-buffered is ~16 MiB; 32 MiB
            # leaves headroom on every generation incl. v7x (64 MiB physical).
            vmem_limit_bytes=32 * 1024 * 1024,
        ),
    )(x, prepared["w"], prepared["b"], prepared["gamma"], prepared["beta"])

    if n_rows != N:
        y = y[:N]
    if keep_padded_d or D_pad == D:
        return y
    # TODO(synk): when d_model is not a 128-multiple, keep the padded layout
    #             flowing into the decoder instead of paying this slice copy.
    return y[:, :D]


def beautydetr_text_branch(last_hidden_state, attention_mask, prepared_params,
                           **kwargs):
    """The BeaUTyDETR text branch:
        text_feats = text_projector(encoded_text.last_hidden_state)
        text_attention_mask = attention_mask.ne(1)
    """
    B, L, H = last_hidden_state.shape
    x = last_hidden_state.reshape(B * L, H)
    y = text_projector_pallas(x, prepared_params, **kwargs)
    text_feats = y.reshape(B, L, y.shape[-1])
    text_attention_mask = attention_mask != 1            # elementwise glue
    return text_feats, text_attention_mask


def _reference_bf16(last_hidden_state, params):
    """Same numerics as the kernel: bf16 matmul operands, f32 accum + f32 LN."""
    B, L, H = last_hidden_state.shape
    x = last_hidden_state.reshape(B * L, H).astype(jnp.bfloat16)
    w = params["w"].astype(jnp.bfloat16)
    h = jnp.dot(x, w, preferred_element_type=jnp.float32) + params["b"]
    mean = jnp.mean(h, axis=-1, keepdims=True)
    cent = h - mean
    var = jnp.mean(cent * cent, axis=-1, keepdims=True)
    y = cent * jax.lax.rsqrt(var + 1e-12) * params["gamma"] + params["beta"]
    return y.reshape(B, L, -1)


def _reference_f32(last_hidden_state, params):
    x = last_hidden_state.astype(jnp.float32)
    h = jnp.einsum("blh,hd->bld", x, params["w"]) + params["b"]
    mean = jnp.mean(h, axis=-1, keepdims=True)
    var = jnp.mean((h - mean) ** 2, axis=-1, keepdims=True)
    return (h - mean) * jax.lax.rsqrt(var + 1e-12) * params["gamma"] + params["beta"]


def _make_params(key, H, D):
    k_w, k_b, k_g, k_be = jax.random.split(key, 4)
    return {
        "w": jax.random.normal(k_w, (H, D), dtype=jnp.float32) * 0.02,
        "b": jax.random.normal(k_b, (D,), dtype=jnp.float32) * 0.02,
        "gamma": jnp.ones((D,), jnp.float32)
                 + 0.01 * jax.random.normal(k_g, (D,), dtype=jnp.float32),
        "beta": 0.01 * jax.random.normal(k_be, (D,), dtype=jnp.float32),
    }


if __name__ == "__main__":
    key = jax.random.PRNGKey(0)
    k_case1, k_case2 = jax.random.split(key, 2)

    # ---- Case 1: shapes consistent with the module (B=2 sentences, L=8
    # "longest"-padded tokens, hidden 64 stand-in for 768, d_model 128). ----
    B, L, H, D = 2, 8, 64, 128
    k_x, k_p = jax.random.split(k_case1, 2)
    last_hidden_state = jax.random.normal(k_x, (B, L, H), dtype=jnp.float32)
    attention_mask = jnp.concatenate(
        [jnp.ones((B, L - 2), jnp.int32), jnp.zeros((B, 2), jnp.int32)], axis=1)
    params = _make_params(k_p, H, D)
    prepared = prepare_text_projector_params(
        params["w"], params["b"], params["gamma"], params["beta"])

    text_feats, text_mask = beautydetr_text_branch(
        last_hidden_state, attention_mask, prepared)
    text_feats = jax.block_until_ready(text_feats)
    text_mask = jax.block_until_ready(text_mask)

    assert text_feats.shape == (B, L, D)
    assert text_mask.shape == (B, L) and text_mask.dtype == jnp.bool_
    assert jnp.allclose(text_feats, _reference_bf16(last_hidden_state, params),
                        atol=2e-3, rtol=2e-3)
    assert jnp.allclose(text_feats, _reference_f32(last_hidden_state, params),
                        atol=5e-2, rtol=5e-2)

    # ---- Case 2: exercise the masked-LN path (d_model=96 -> padded to 128)
    # and the ragged trailing row block (N=20 rows, tile=16, grid=2). ----
    B2, L2, H2, D2 = 2, 10, 64, 96
    k_x2, k_p2 = jax.random.split(k_case2, 2)
    lhs2 = jax.random.normal(k_x2, (B2, L2, H2), dtype=jnp.float32)
    mask2 = jnp.ones((B2, L2), jnp.int32)
    params2 = _make_params(k_p2, H2, D2)
    prepared2 = prepare_text_projector_params(
        params2["w"], params2["b"], params2["gamma"], params2["beta"])

    feats2, _ = beautydetr_text_branch(lhs2, mask2, prepared2)
    feats2 = jax.block_until_ready(feats2)
    assert feats2.shape == (B2, L2, D2)
    assert jnp.allclose(feats2, _reference_bf16(lhs2, params2),
                        atol=2e-3, rtol=2e-3)
    assert jnp.allclose(feats2, _reference_f32(lhs2, params2),
                        atol=5e-2, rtol=5e-2)

    print("KERNEL_OK")
</pallas_src>

<mosaic_0001>
module attributes {stable_mosaic.version = 11 : i64} {
  func.func @_text_projector_kernel(%arg0: i32, %arg1: memref<16x64xf32, #tpu.memory_space<vmem>>, %arg2: memref<64x128xbf16, #tpu.memory_space<vmem>>, %arg3: memref<1x128xf32, #tpu.memory_space<vmem>>, %arg4: memref<1x128xf32, #tpu.memory_space<vmem>>, %arg5: memref<1x128xf32, #tpu.memory_space<vmem>>, %arg6: memref<16x128xf32, #tpu.memory_space<vmem>>) attributes {dimension_semantics = [#tpu.dimension_semantics<parallel>], iteration_bounds = array<i64: 1>, scalar_prefetch = 0 : i64, scratch_operands = 0 : i64, tpu.core_type = #tpu.core_type<tc>, window_params = [{transform_indices = @transform_0, window_bounds = array<i64: 16, 64>}, {pipeline_mode = #tpu.pipeline_mode<synchronous>, transform_indices = @transform_1, window_bounds = array<i64: 64, 128>}, {pipeline_mode = #tpu.pipeline_mode<synchronous>, transform_indices = @transform_2, window_bounds = array<i64: 1, 128>}, {pipeline_mode = #tpu.pipeline_mode<synchronous>, transform_indices = @transform_3, window_bounds = array<i64: 1, 128>}, {pipeline_mode = #tpu.pipeline_mode<synchronous>, transform_indices = @transform_4, window_bounds = array<i64: 1, 128>}, {transform_indices = @transform_5, window_bounds = array<i64: 16, 128>}]} {
    %c0 = arith.constant 0 : index
    %c0_0 = arith.constant 0 : index
    %0 = vector.load %arg1[%c0, %c0_0] : memref<16x64xf32, #tpu.memory_space<vmem>>, vector<16x64xf32>
    %1 = arith.truncf %0 : vector<16x64xf32> to vector<16x64xbf16>
    %c0_1 = arith.constant 0 : index
    %c0_2 = arith.constant 0 : index
    %2 = vector.load %arg2[%c0_1, %c0_2] : memref<64x128xbf16, #tpu.memory_space<vmem>>, vector<64x128xbf16>
    %cst = arith.constant dense<0.000000e+00> : vector<16x128xf32>
    %3 = tpu.matmul %1, %2, %cst {dimension_numbers = #tpu.dot_dimension_numbers<[1], [0], [0], [1], [0, 0, 1, 1], [], []>} : vector<16x64xbf16>, vector<64x128xbf16>, vector<16x128xf32> -> vector<16x128xf32>
    %c0_3 = arith.constant 0 : index
    %c0_4 = arith.constant 0 : index
    %4 = vector.load %arg3[%c0_3, %c0_4] : memref<1x128xf32, #tpu.memory_space<vmem>>, vector<1x128xf32>
    %5 = vector.broadcast %4 : vector<1x128xf32> to vector<16x128xf32>
    %6 = arith.addf %3, %5 : vector<16x128xf32>
    %cst_5 = arith.constant dense<0.000000e+00> : vector<16xf32>
    %7 = vector.multi_reduction <add>, %6, %cst_5 [1] : vector<16x128xf32> to vector<16xf32>
    %8 = vector.shape_cast %7 : vector<16xf32> to vector<16x1xf32>
    %cst_6 = arith.constant 1.280000e+02 : f32
    %9 = vector.broadcast %cst_6 : f32 to vector<16x1xf32>
    %10 = arith.divf %8, %9 : vector<16x1xf32>
    %11 = vector.broadcast %10 : vector<16x1xf32> to vector<16x128xf32>
    %12 = arith.subf %6, %11 : vector<16x128xf32>
    %13 = arith.mulf %12, %12 : vector<16x128xf32>
    %cst_7 = arith.constant dense<0.000000e+00> : vector<16xf32>
    %14 = vector.multi_reduction <add>, %13, %cst_7 [1] : vector<16x128xf32> to vector<16xf32>
    %15 = vector.shape_cast %14 : vector<16xf32> to vector<16x1xf32>
    %cst_8 = arith.constant 7.812500e-03 : f32
    %16 = vector.broadcast %cst_8 : f32 to vector<16x1xf32>
    %17 = arith.mulf %15, %16 : vector<16x1xf32>
    %cst_9 = arith.constant 9.99999996E-13 : f32
    %18 = vector.broadcast %cst_9 : f32 to vector<16x1xf32>
    %19 = arith.addf %17, %18 : vector<16x1xf32>
    %20 = math.rsqrt %19 : vector<16x1xf32>
    %c0_10 = arith.constant 0 : index
    %c0_11 = arith.constant 0 : index
    %21 = vector.load %arg4[%c0_10, %c0_11] : memref<1x128xf32, #tpu.memory_space<vmem>>, vector<1x128xf32>
    %22 = vector.broadcast %20 : vector<16x1xf32> to vector<16x128xf32>
    %23 = vector.broadcast %21 : vector<1x128xf32> to vector<16x128xf32>
    %24 = arith.mulf %22, %23 : vector<16x128xf32>
    %25 = arith.mulf %12, %24 : vector<16x128xf32>
    %c0_12 = arith.constant 0 : index
    %c0_13 = arith.constant 0 : index
    %26 = vector.load %arg5[%c0_12, %c0_13] : memref<1x128xf32, #tpu.memory_space<vmem>>, vector<1x128xf32>
    %27 = vector.broadcast %26 : vector<1x128xf32> to vector<16x128xf32>
    %28 = arith.addf %25, %27 : vector<16x128xf32>
    %c0_14 = arith.constant 0 : index
    %c0_15 = arith.constant 0 : index
    %29 = vector.load %arg6[%c0_14, %c0_15] : memref<16x128xf32, #tpu.memory_space<vmem>>, vector<16x128xf32>
    tpu.vector_store %arg6[%c0_14, %c0_15], %28 {strides = array<i32>} : memref<16x128xf32, #tpu.memory_space<vmem>>, vector<16x128xf32>,
    return
  }
  func.func @transform_0(%arg0: i32) -> (i32, i32) {
    %c0_i32 = arith.constant 0 : i32
    %c0_i32_0 = arith.constant 0 : i32
    return %arg0, %c0_i32 : i32, i32
  }
  func.func @transform_1(%arg0: i32) -> (i32, i32) {
    %c0_i32 = arith.constant 0 : i32
    %c0_i32_0 = arith.constant 0 : i32
    %c0_i32_1 = arith.constant 0 : i32
    return %c0_i32, %c0_i32_0 : i32, i32
  }
  func.func @transform_2(%arg0: i32) -> (i32, i32) {
    %c0_i32 = arith.constant 0 : i32
    %c0_i32_0 = arith.constant 0 : i32
    %c0_i32_1 = arith.constant 0 : i32
    return %c0_i32, %c0_i32_0 : i32, i32
  }
  func.func @transform_3(%arg0: i32) -> (i32, i32) {
    %c0_i32 = arith.constant 0 : i32
    %c0_i32_0 = arith.constant 0 : i32
    %c0_i32_1 = arith.constant 0 : i32
    return %c0_i32, %c0_i32_0 : i32, i32
  }
  func.func @transform_4(%arg0: i32) -> (i32, i32) {
    %c0_i32 = arith.constant 0 : i32
    %c0_i32_0 = arith.constant 0 : i32
    %c0_i32_1 = arith.constant 0 : i32
    return %c0_i32, %c0_i32_0 : i32, i32
  }
  func.func @transform_5(%arg0: i32) -> (i32, i32) {
    %c0_i32 = arith.constant 0 : i32
    %c0_i32_0 = arith.constant 0 : i32
    return %arg0, %c0_i32 : i32, i32
  }
}

</mosaic_0001>

<llo_original>
// kernel: tpu_custom_call.1
$region0: #{tpu_custom_call.1}
  #allocation0 [shape = 'u32[]', space=smem, size = 0x4, offset = 0x4, fixed_abs, tag = 'smem constant byte address 0x4 - core index']
  #allocation1 [shape = 'u32[144,128]{1,0:T(1,128)}', space=vmem, size = 0x12000, scoped, tag = 'internal scratch']
  %s0 = inlined_call_operand.hbm [shape: f32[16,64], index: 0, kind: input, shape index: {}]
  %s1 = inlined_call_operand.hbm [shape: bf16[64,128], index: 1, kind: input, shape index: {}]
  %s2 = inlined_call_operand.vmem [shape: f32[1,128], index: 2, kind: input, shape index: {}]
  %s3 = inlined_call_operand.vmem [shape: f32[1,128], index: 3, kind: input, shape index: {}]
  %s4 = inlined_call_operand.vmem [shape: f32[1,128], index: 4, kind: input, shape index: {}]
  %s5 = inlined_call_operand.hbm [shape: f32[16,128], index: 5, kind: output, shape index: {}]
  %s6 = sld [smem:[#allocation0]]
  $region38: #{tpu_custom_call.1} parent=0
    _
  %s8 = ssub.s32 1, %s6
  %s9 = scalar_select 0, %s8, %s6
  $region1: #{tpu_custom_call.1} parent=0
    #allocation2 [shape = 'u8[8192]{0}', space=vmem, size = 0x2000, scoped, tag = 'input window, operand 0, single buffered']
    #allocation3 [shape = 's32[1]{0}', space=sflag, size = 0x4, scoped, tag = 'scoped memory for tpu_custom_call.1']
    #allocation4 [shape = 's32[1]{0}', space=sflag, size = 0x4, scoped, tag = 'scoped memory for tpu_custom_call.1']
    #allocation5 [shape = 'u8[16384]{0}', space=vmem, size = 0x4000, scoped, tag = 'input window, operand 1, single buffered']
    #allocation6 [shape = 's32[1]{0}', space=sflag, size = 0x4, scoped, tag = 'scoped memory for tpu_custom_call.1']
    #allocation7 [shape = 'u8[8192]{0}', space=vmem, size = 0x2000, scoped, tag = 'output window, operand 0, single buffered']
    %10 = vsyncpa [#allocation3], 0
    %11 = vsyncpa [#allocation6], 0
    %12 = vsyncpa [#allocation4], 0
    // Predicated region
    $region2: #{tpu_custom_call.1} parent=1 // pred_check
      _
    $region3: #{tpu_custom_call.1} parent=1 // pred_check_branch
      %14 = sbr.rel (0) target = $region5
    $region4: #{tpu_custom_call.1} parent=1 // pred_region
      %s16 = ssub.s32 256, 256
      %17 = vsyncadd [#allocation3], %s16
      %s18 = sshll.u32 [#allocation2], 4
      %s19 = int_to_ptr.vmem [resolvable:$true] %s18
      %24 = dma.hbm_to_vmem [thread:$0]  %s0, 256, %s19, [#allocation3], 128, 128, 8
    $region5: #{tpu_custom_call.1} parent=1 // pred_fallthru
      _
    // Predicated region
    $region6: #{tpu_custom_call.1} parent=1 // pred_check
      _
    $region7: #{tpu_custom_call.1} parent=1 // pred_check_branch
      %26 = sbr.rel (0) target = $region9
    $region8: #{tpu_custom_call.1} parent=1 // pred_region
      %s28 = ssub.s32 512, 512
      %29 = vsyncadd [#allocation6], %s28
      %s30 = sshll.u32 [#allocation5], 4
      %s31 = int_to_ptr.vmem [resolvable:$true] %s30
      %36 = dma.hbm_to_vmem [thread:$0]  %s1, 512, %s31, [#allocation6], 64, 64, 4
    $region9: #{tpu_custom_call.1} parent=1 // pred_fallthru
      _
    // Predicated region
    $region10: #{tpu_custom_call.1} parent=1 // pred_check
      _
    $region11: #{tpu_custom_call.1} parent=1 // pred_check_branch
      %38 = sbr.rel (0) target = $region13
    $region12: #{tpu_custom_call.1} parent=1 // pred_region
      _
    $region13: #{tpu_custom_call.1} parent=1 // pred_fallthru
      _
    // Predicated region
    $region14: #{tpu_custom_call.1} parent=1 // pred_check
      _
    $region15: #{tpu_custom_call.1} parent=1 // pred_check_branch
      %40 = sbr.rel (0) target = $region17
    $region16: #{tpu_custom_call.1} parent=1 // pred_region
      _
    $region17: #{tpu_custom_call.1} parent=1 // pred_fallthru
      _
    // Predicated region
    $region18: #{tpu_custom_call.1} parent=1 // pred_check
      _
    $region19: #{tpu_custom_call.1} parent=1 // pred_check_branch
      %42 = sbr.rel (0) target = $region21
    $region20: #{tpu_custom_call.1} parent=1 // pred_region
      _
    $region21: #{tpu_custom_call.1} parent=1 // pred_fallthru
      _
    // Predicated region
    $region22: #{tpu_custom_call.1} parent=1 // pred_check
      _
    $region23: #{tpu_custom_call.1} parent=1 // pred_check_branch
      %44 = sbr.rel (0) target = $region25
    $region24: #{tpu_custom_call.1} parent=1 // pred_region
      %45 = dma.done [#allocation3], 256
    $region25: #{tpu_custom_call.1} parent=1 // pred_fallthru
      _
    // Predicated region
    $region26: #{tpu_custom_call.1} parent=1 // pred_check
      _
    $region27: #{tpu_custom_call.1} parent=1 // pred_check_branch
      %47 = sbr.rel (0) target = $region29
    $region28: #{tpu_custom_call.1} parent=1 // pred_region
      %48 = dma.done [#allocation6], 512
    $region29: #{tpu_custom_call.1} parent=1 // pred_fallthru
      _
    %v50 = vld [vmem:[#allocation2] sm:$0xff]
    %v51 = vld [vmem:[#allocation2 + $0x8] sm:$0xff]
    %v52 = vpack.c.bf16 %v51, %v50
    %v53 = vld [vmem:[#allocation5] sm:$0xf]
    %v54 = vld [vmem:[#allocation5 + $0x4] sm:$0xf]
    %v55 = vld [vmem:[#allocation5 + $0x8] sm:$0xf]
    %v56 = vld [vmem:[#allocation5 + $0xc] sm:$0xf]
    %v57 = vld [vmem:[#allocation5 + $0x10] sm:$0xf]
    %v58 = vld [vmem:[#allocation5 + $0x14] sm:$0xf]
    %v59 = vld [vmem:[#allocation5 + $0x18] sm:$0xf]
    %v60 = vld [vmem:[#allocation5 + $0x1c] sm:$0xf]
    %v61 = vld [vmem:[%s2] sm:$0x1]
    %v63 = vlaneseq
    %v64 = vshrl.u32 %v63, 7
    %v65 = vsub.s32 0, %v64
    %v66 = vrot.slane %v61, %v65
    %v76 = vunpack.c.l.b16 %v53
    %v77 = vunpack.c.l.b16 %v54
    %v78 = vunpack.c.l.b16 %v55
    %v79 = vunpack.c.l.b16 %v56
    %v80 = vunpack.c.l.b16 %v57
    %v81 = vunpack.c.l.b16 %v58
    %v82 = vunpack.c.l.b16 %v59
    %v83 = vunpack.c.l.b16 %v60
    %v84 = vpack.c.b16 %v77, %v76
    %v85 = vpack.c.b16 %v79, %v78
    %v86 = vpack.c.b16 %v81, %v80
    %v87 = vpack.c.b16 %v83, %v82
    %vm92 = vcmask 523264
    %v94 = vsel %vm92, %v52, 0
    %96 = vmatprep.subr.bf16.mxu0 0
    %97 = vmatpush1.bf16.msra.mxu0 %v84
    %98 = vmatprep.subr.bf16.mxu0 0
    %99 = vmatpush1.bf16.msra.mxu0 %v85
    %100 = vmatprep.subr.bf16.mxu0 0
    %101 = vmatpush1.bf16.msra.mxu0 %v86
    %102 = vmatprep.subr.bf16.mxu0 0
    %103 = vmatpush1.bf16.msra.mxu0 %v87
    %104 = vmatprep.subr.bf16.mxu0 0
    %105 = vmatpush1.bf16.msra.mxu0 0
    %106 = vmatprep.subr.bf16.mxu0 0
    %107 = vmatpush1.bf16.msra.mxu0 0
    %108 = vmatprep.subr.bf16.mxu0 0
    %109 = vmatpush1.bf16.msra.mxu0 0
    %110 = vmatprep.subr.bf16.mxu0 0
    %111 = vmatpush1.bf16.msra.mxu0 0
    %112 = vmatprep.subr.bf16.mxu0 0
    %113 = vmatpush1.bf16.msra.mxu0 0
    %114 = vmatprep.subr.bf16.mxu0 0
    %115 = vmatpush1.bf16.msra.mxu0 0
    %116 = vmatprep.subr.bf16.mxu0 0
    %117 = vmatpush1.bf16.msra.mxu0 0
    %118 = vmatprep.subr.bf16.mxu0 0
    %119 = vmatpush1.bf16.msra.mxu0 0
    %120 = vmatprep.subr.bf16.mxu0 0
    %121 = vmatpush1.bf16.msra.mxu0 0
    %122 = vmatprep.subr.bf16.mxu0 0
    %123 = vmatpush1.bf16.msra.mxu0 0
    %124 = vmatprep.subr.bf16.mxu0 0
    %125 = vmatpush1.bf16.msra.mxu0 0
    %126 = vmatprep.subr.bf16.mxu0 0
    %127 = vmatpush1.bf16.msra.mxu0 0
    %128 = vmatprep.mubr.bf16.mxu0 0
    %129 = vmatmul.mubr.bf16.gmra.mrb[0].mxu0 %v94
    %v130 = vpop.f32.mrb[0].mxu0
    %v131 = vadd.f32 %v66, %v130
    %v132 = vpop.f32.mrb[0].mxu0
    %v133 = vpop.f32.mrb[0].mxu0
    %v134 = vadd.f32 %v66, %v133
    %v135 = vpop.f32.mrb[0].mxu0
    %136 = vdwg.mxu0
    %137 = vadd.xlane.f32.xlu0 %v131
    %v138 = vpop.xlane.xlu0 %137
    %139 = vadd.xlane.f32.xlu0 %v134
    %v140 = vpop.xlane.xlu0 %139
    %v141 = vrcp.pop 128.0
    %v142 = vmul.f32 %v138, %v141
    %v143 = vmul.f32 %v140, %v141
    %v144 = vsub.f32 %v131, %v142
    %v145 = vsub.f32 %v134, %v143
    %v146 = vmul.f32 %v144, %v144
    %v147 = vmul.f32 %v145, %v145
    %148 = vadd.xlane.f32.xlu0 %v146
    %v149 = vpop.xlane.xlu0 %148
    %150 = vadd.xlane.f32.xlu0 %v147
    %v151 = vpop.xlane.xlu0 %150
    %v152 = vmul.f32 %v149, 0.0078125
    %v153 = vmul.f32 %v151, 0.0078125
    %v154 = vadd.f32 %v152, 1e-12
    %v155 = vadd.f32 %v153, 1e-12
    %v156 = vrsqrt.pop %v154
    %v157 = vrsqrt.pop %v155
    %v158 = vld [vmem:[%s3] sm:$0x1]
    %v160 = vlaneseq
    %v161 = vshrl.u32 %v160, 7
    %v162 = vsub.s32 0, %v161
    %v163 = vrot.slane %v158, %v162
    %v165 = vmul.f32 %v156, %v163
    %v166 = vmul.f32 %v157, %v163
    %v167 = vmul.f32 %v144, %v165
    %v168 = vmul.f32 %v145, %v166
    %v169 = vld [vmem:[%s4] sm:$0x1]
    %v171 = vlaneseq
    %v172 = vshrl.u32 %v171, 7
    %v173 = vsub.s32 0, %v172
    %v174 = vrot.slane %v169, %v173
    %v176 = vadd.f32 %v167, %v174
    %v177 = vadd.f32 %v168, %v174
    %178 = vst [vmem:[#allocation7] sm:$0xff] %v176
    %179 = vst [vmem:[#allocation7 + $0x8] sm:$0xff] %v177
    // Predicated region
    $region30: #{tpu_custom_call.1} parent=1 // pred_check
      _
    $region31: #{tpu_custom_call.1} parent=1 // pred_check_branch
      %181 = sbr.rel (0) target = $region33
    $region32: #{tpu_custom_call.1} parent=1 // pred_region
      %s183 = ssub.s32 256, 256
      %184 = vsyncadd [#allocation4], %s183
      %s185 = sshll.u32 [#allocation7], 4
      %s186 = int_to_ptr.vmem [resolvable:$true] %s185
      %191 = dma.vmem_to_hbm [thread:$0]  %s186, 256, %s5, [#allocation4], 128, 128, 8
    $region33: #{tpu_custom_call.1} parent=1 // pred_fallthru
      _
    // Predicated region
    $region34: #{tpu_custom_call.1} parent=1 // pred_check
      _
    $region35: #{tpu_custom_call.1} parent=1 // pred_check_branch
      %193 = sbr.rel (0) target = $region37
    $region36: #{tpu_custom_call.1} parent=1 // pred_region
      %194 = dma.done [#allocation4], 256
    $region37: #{tpu_custom_call.1} parent=1 // pred_fallthru
      _
    %195 = vsyncpa [#allocation3], 1
    %196 = vsyncpa [#allocation6], 1
    %197 = vsyncpa [#allocation4], 1

</llo_original>
